<compile_context>
chip_gen: v7x
topology: tpu7x:2x2x1
jax: 0.10.0
libtpu: 0.0.40
codegen_flags: <defaults>
</compile_context>

<pallas_src>
from functools import partial

import jax
import jax.numpy as jnp
from jax.experimental import pallas as pl
from jax.experimental.pallas import tpu as pltpu


def _group_norm_kernel(x_ref, w_ref, b_ref, o_ref, *, eps, length):
    # x_ref block: (Nb, G, Cg*HW) — each row is one (batch, group).
    x = x_ref[...].astype(jnp.float32)
    # One-pass statistics (single elementwise pass, two in-lane reductions).
    s1 = jnp.sum(x, axis=-1, keepdims=True)              # (Nb, G, 1)
    s2 = jnp.sum(x * x, axis=-1, keepdims=True)          # (Nb, G, 1)
    mean = s1 * (1.0 / length)
    # torch Tensor.var(dim) default is unbiased (correction=1): divide by n-1.
    var = jnp.maximum(s2 - s1 * mean, 0.0) * (1.0 / (length - 1))
    inv = jax.lax.rsqrt(var + eps)                       # EUP slot
    w = w_ref[...].astype(jnp.float32)                   # (G, Cg*HW), VMEM-resident
    b = b_ref[...].astype(jnp.float32)
    o_ref[...] = ((x - mean) * inv * w + b).astype(o_ref.dtype)


def precompute_affine(weight, bias, num_groups, H, W):
    """Broadcast (1, C, 1, 1) affine params ONCE to (G, Cg*HW) f32 slabs.

    Done outside the per-call path so no broadcast op / extra HBM pass runs
    per forward; the slabs get a constant index_map and stay VMEM-resident.
    """
    C = weight.shape[1]
    G = num_groups
    Cg = C // G
    HW = H * W
    w_r = jnp.broadcast_to(
        weight.reshape(G, Cg, 1).astype(jnp.float32), (G, Cg, HW)
    ).reshape(G, Cg * HW)
    b_r = jnp.broadcast_to(
        bias.reshape(G, Cg, 1).astype(jnp.float32), (G, Cg, HW)
    ).reshape(G, Cg * HW)
    return w_r, b_r


def _vmem_capacity_bytes():
    try:
        return int(pltpu.get_tpu_info().vmem_capacity_bytes)
    except Exception:
        return 64 << 20  # conservative (v7x-sized) fallback


def _pick_batch_block(N, per_elem_bytes, target_block_bytes):
    nb = max(1, min(N, target_block_bytes // max(per_elem_bytes, 1)))
    total = N * per_elem_bytes
    # Keep >=2 grid steps when the problem is big enough to benefit from both
    # v7x TensorCores; collapse to one step when everything is tiny.
    if total > (256 << 10) and N >= 2:
        nb = min(nb, max(1, N // 2))
    while N % nb:  # keep blocks exact (no padded/clamped edge block)
        nb -= 1
    return nb


def group_norm_pallas(x, w_r, b_r, num_groups=32, eps=1e-5):
    """x: (N, C, H, W); w_r/b_r: pre-broadcast (G, Cg*HW) slabs."""
    N, C, H, W = x.shape
    G = num_groups
    assert C % G == 0
    Cg = C // G
    HW = H * W
    CgHW = Cg * HW
    assert CgHW > 1, "unbiased variance needs at least 2 elements per group"

    # Lane-dense layout: last dim is the full group (Cg*HW), rows are groups.
    # Pure reshape — no data movement in HBM.
    x_r = x.reshape(N, G, CgHW)

    itemsize_in = jnp.dtype(x.dtype).itemsize
    per_elem_bytes = G * CgHW * itemsize_in
    vmem_cap = _vmem_capacity_bytes()
    # ~1-4 MiB input blocks depending on generation (128 MiB v5e/v6e, 64 MiB v7x).
    target_block_bytes = max(1 << 20, min(4 << 20, vmem_cap // 32))
    nb = _pick_batch_block(N, per_elem_bytes, target_block_bytes)
    num_blocks = N // nb

    in_block = nb * per_elem_bytes
    out_block = nb * G * CgHW * jnp.dtype(x.dtype).itemsize
    slab_bytes = 2 * G * CgHW * 4
    vmem_need = 2 * (in_block + out_block) + slab_bytes + (1 << 20)
    vmem_limit = int(min(vmem_cap // 2, max(vmem_need, 16 << 20)))

    nbytes = x.size * itemsize_in
    cost = pl.CostEstimate(
        flops=int(8 * x.size),
        transcendentals=int(N * G),
        bytes_accessed=int(2 * nbytes + 2 * slab_bytes),
    )

    kernel = partial(_group_norm_kernel, eps=eps, length=CgHW)
    out = pl.pallas_call(
        kernel,
        out_shape=jax.ShapeDtypeStruct((N, G, CgHW), x.dtype),
        grid=(num_blocks,),
        in_specs=[
            pl.BlockSpec((nb, G, CgHW), lambda n: (n, 0, 0)),
            pl.BlockSpec((G, CgHW), lambda n: (0, 0)),  # VMEM-resident
            pl.BlockSpec((G, CgHW), lambda n: (0, 0)),  # VMEM-resident
        ],
        out_specs=pl.BlockSpec((nb, G, CgHW), lambda n: (n, 0, 0)),
        compiler_params=pltpu.CompilerParams(
            dimension_semantics=("parallel",),
            vmem_limit_bytes=vmem_limit,
        ),
        cost_estimate=cost,
    )(x_r, w_r, b_r)
    return out.reshape(N, C, H, W)


def test_module_forward(x, weight, bias, num_groups=32, eps=1e-5):
    # Convenience one-shot wrapper (slab precompute + kernel). In a real model
    # precompute_affine would be called once at parameter-setup time.
    N, C, H, W = x.shape
    w_r, b_r = precompute_affine(weight, bias, num_groups, H, W)
    out1 = group_norm_pallas(x, w_r, b_r, num_groups=num_groups, eps=eps)
    return (out1,)


def _reference(x, weight, bias, num_groups=32, eps=1e-5):
    N, C, H, W = x.shape
    G = num_groups
    xr = x.reshape(N, G, -1).astype(jnp.float32)
    mean = jnp.mean(xr, axis=-1, keepdims=True)
    var = jnp.var(xr, axis=-1, keepdims=True, ddof=1)  # unbiased, like torch
    xn = (xr - mean) / jnp.sqrt(var + eps)
    xn = xn.reshape(N, C, H, W)
    return xn * weight + bias


if __name__ == "__main__":
    # Small shapes consistent with the module: C must be 128 (num_features).
    N, C, H, W = 2, 128, 8, 8

    key = jax.random.PRNGKey(0)
    x = jax.random.normal(key, (N, C, H, W), dtype=jnp.float32)

    # Deterministic parameter init, matching PythonGroupNorm.__init__.
    weight = jnp.ones((1, C, 1, 1), dtype=jnp.float32)
    bias = jnp.zeros((1, C, 1, 1), dtype=jnp.float32)

    (out,) = test_module_forward(x, weight, bias)
    out = jax.block_until_ready(out)

    ref = _reference(x, weight, bias)
    assert out.shape == (N, C, H, W)
    assert jnp.allclose(out, ref, atol=1e-4, rtol=1e-4), "mismatch vs reference"

    print("KERNEL_OK")
</pallas_src>

<mosaic_0001>
module attributes {stable_mosaic.version = 11 : i64} {
  func.func @_group_norm_kernel(%arg0: i32, %arg1: memref<2x32x256xf32, #tpu.memory_space<vmem>>, %arg2: memref<32x256xf32, #tpu.memory_space<vmem>>, %arg3: memref<32x256xf32, #tpu.memory_space<vmem>>, %arg4: memref<2x32x256xf32, #tpu.memory_space<vmem>>) attributes {dimension_semantics = [#tpu.dimension_semantics<parallel>], iteration_bounds = array<i64: 1>, scalar_prefetch = 0 : i64, scratch_operands = 0 : i64, tpu.core_type = #tpu.core_type<tc>, window_params = [{transform_indices = @transform_0, window_bounds = array<i64: 2, 32, 256>}, {pipeline_mode = #tpu.pipeline_mode<synchronous>, transform_indices = @transform_1, window_bounds = array<i64: 32, 256>}, {pipeline_mode = #tpu.pipeline_mode<synchronous>, transform_indices = @transform_2, window_bounds = array<i64: 32, 256>}, {transform_indices = @transform_3, window_bounds = array<i64: 2, 32, 256>}]} {
    %c0 = arith.constant 0 : index
    %c0_0 = arith.constant 0 : index
    %c0_1 = arith.constant 0 : index
    %0 = vector.load %arg1[%c0, %c0_0, %c0_1] : memref<2x32x256xf32, #tpu.memory_space<vmem>>, vector<2x32x256xf32>
    %cst = arith.constant dense<0.000000e+00> : vector<2x32xf32>
    %1 = vector.multi_reduction <add>, %0, %cst [2] : vector<2x32x256xf32> to vector<2x32xf32>
    %2 = vector.shape_cast %1 : vector<2x32xf32> to vector<2x32x1xf32>
    %3 = arith.mulf %0, %0 : vector<2x32x256xf32>
    %cst_2 = arith.constant dense<0.000000e+00> : vector<2x32xf32>
    %4 = vector.multi_reduction <add>, %3, %cst_2 [2] : vector<2x32x256xf32> to vector<2x32xf32>
    %5 = vector.shape_cast %4 : vector<2x32xf32> to vector<2x32x1xf32>
    %cst_3 = arith.constant 3.906250e-03 : f32
    %6 = vector.broadcast %cst_3 : f32 to vector<2x32x1xf32>
    %7 = arith.mulf %2, %6 : vector<2x32x1xf32>
    %8 = arith.mulf %2, %7 : vector<2x32x1xf32>
    %9 = arith.subf %5, %8 : vector<2x32x1xf32>
    %cst_4 = arith.constant 0.000000e+00 : f32
    %10 = vector.broadcast %cst_4 : f32 to vector<2x32x1xf32>
    %11 = arith.maximumf %9, %10 : vector<2x32x1xf32>
    %cst_5 = arith.constant 0.00392156886 : f32
    %12 = vector.broadcast %cst_5 : f32 to vector<2x32x1xf32>
    %13 = arith.mulf %11, %12 : vector<2x32x1xf32>
    %cst_6 = arith.constant 9.99999974E-6 : f32
    %14 = vector.broadcast %cst_6 : f32 to vector<2x32x1xf32>
    %15 = arith.addf %13, %14 : vector<2x32x1xf32>
    %16 = math.rsqrt %15 : vector<2x32x1xf32>
    %c0_7 = arith.constant 0 : index
    %c0_8 = arith.constant 0 : index
    %17 = vector.load %arg2[%c0_7, %c0_8] : memref<32x256xf32, #tpu.memory_space<vmem>>, vector<32x256xf32>
    %c0_9 = arith.constant 0 : index
    %c0_10 = arith.constant 0 : index
    %18 = vector.load %arg3[%c0_9, %c0_10] : memref<32x256xf32, #tpu.memory_space<vmem>>, vector<32x256xf32>
    %19 = vector.broadcast %7 : vector<2x32x1xf32> to vector<2x32x256xf32>
    %20 = arith.subf %0, %19 : vector<2x32x256xf32>
    %21 = vector.broadcast %16 : vector<2x32x1xf32> to vector<2x32x256xf32>
    %22 = arith.mulf %20, %21 : vector<2x32x256xf32>
    %23 = vector.shape_cast %17 : vector<32x256xf32> to vector<1x32x256xf32>
    %24 = vector.broadcast %23 : vector<1x32x256xf32> to vector<2x32x256xf32>
    %25 = arith.mulf %22, %24 : vector<2x32x256xf32>
    %26 = vector.shape_cast %18 : vector<32x256xf32> to vector<1x32x256xf32>
    %27 = vector.broadcast %26 : vector<1x32x256xf32> to vector<2x32x256xf32>
    %28 = arith.addf %25, %27 : vector<2x32x256xf32>
    %c0_11 = arith.constant 0 : index
    %c0_12 = arith.constant 0 : index
    %c0_13 = arith.constant 0 : index
    %29 = vector.load %arg4[%c0_11, %c0_12, %c0_13] : memref<2x32x256xf32, #tpu.memory_space<vmem>>, vector<2x32x256xf32>
    tpu.vector_store %arg4[%c0_11, %c0_12, %c0_13], %28 {strides = array<i32>} : memref<2x32x256xf32, #tpu.memory_space<vmem>>, vector<2x32x256xf32>,
    return
  }
  func.func @transform_0(%arg0: i32) -> (i32, i32, i32) {
    %c0_i32 = arith.constant 0 : i32
    %c0_i32_0 = arith.constant 0 : i32
    %c0_i32_1 = arith.constant 0 : i32
    return %arg0, %c0_i32, %c0_i32_0 : i32, i32, i32
  }
  func.func @transform_1(%arg0: i32) -> (i32, i32) {
    %c0_i32 = arith.constant 0 : i32
    %c0_i32_0 = arith.constant 0 : i32
    %c0_i32_1 = arith.constant 0 : i32
    return %c0_i32, %c0_i32_0 : i32, i32
  }
  func.func @transform_2(%arg0: i32) -> (i32, i32) {
    %c0_i32 = arith.constant 0 : i32
    %c0_i32_0 = arith.constant 0 : i32
    %c0_i32_1 = arith.constant 0 : i32
    return %c0_i32, %c0_i32_0 : i32, i32
  }
  func.func @transform_3(%arg0: i32) -> (i32, i32, i32) {
    %c0_i32 = arith.constant 0 : i32
    %c0_i32_0 = arith.constant 0 : i32
    %c0_i32_1 = arith.constant 0 : i32
    return %arg0, %c0_i32, %c0_i32_0 : i32, i32, i32
  }
}

</mosaic_0001>

<llo_original>
// kernel: tpu_custom_call.1
$region0: #{tpu_custom_call.1}
  #allocation0 [shape = 'u32[]', space=smem, size = 0x4, offset = 0x4, fixed_abs, tag = 'smem constant byte address 0x4 - core index']
  #allocation1 [shape = 'u32[144,128]{1,0:T(1,128)}', space=vmem, size = 0x12000, scoped, tag = 'internal scratch']
  %s0 = inlined_call_operand.hbm [shape: f32[2,32,256], index: 0, kind: input, shape index: {}]
  %s1 = inlined_call_operand.hbm [shape: f32[32,256], index: 1, kind: input, shape index: {}]
  %s2 = inlined_call_operand.hbm [shape: f32[32,256], index: 2, kind: input, shape index: {}]
  %s3 = inlined_call_operand.hbm [shape: f32[2,32,256], index: 3, kind: output, shape index: {}]
  %s4 = sld [smem:[#allocation0]]
  $region34: #{tpu_custom_call.1} parent=0
    _
  %s6 = ssub.s32 1, %s4
  %s7 = scalar_select 0, %s6, %s4
  $region1: #{tpu_custom_call.1} parent=0
    #allocation2 [shape = 'u8[65536]{0}', space=vmem, size = 0x10000, scoped, tag = 'input window, operand 0, single buffered']
    #allocation3 [shape = 's32[1]{0}', space=sflag, size = 0x4, scoped, tag = 'scoped memory for tpu_custom_call.1']
    #allocation4 [shape = 's32[1]{0}', space=sflag, size = 0x4, scoped, tag = 'scoped memory for tpu_custom_call.1']
    #allocation5 [shape = 'u8[32768]{0}', space=vmem, size = 0x8000, scoped, tag = 'input window, operand 1, single buffered']
    #allocation6 [shape = 's32[1]{0}', space=sflag, size = 0x4, scoped, tag = 'scoped memory for tpu_custom_call.1']
    #allocation7 [shape = 'u8[32768]{0}', space=vmem, size = 0x8000, scoped, tag = 'input window, operand 2, single buffered']
    #allocation8 [shape = 'u8[65536]{0}', space=vmem, size = 0x10000, scoped, tag = 'output window, operand 0, single buffered']
    %8 = vsyncpa [#allocation3], 0
    %9 = vsyncpa [#allocation6], 0
    %10 = vsyncpa [#allocation4], 0
    // Predicated region
    $region2: #{tpu_custom_call.1} parent=1 // pred_check
      _
    $region3: #{tpu_custom_call.1} parent=1 // pred_check_branch
      %12 = sbr.rel (0) target = $region5
    $region4: #{tpu_custom_call.1} parent=1 // pred_region
      %s14 = ssub.s32 2048, 2048
      %15 = vsyncadd [#allocation3], %s14
      %s16 = sshll.u32 [#allocation2], 4
      %s17 = int_to_ptr.vmem [resolvable:$true] %s16
      %22 = dma.hbm_to_vmem [thread:$0]  %s0, 2048, %s17, [#allocation3], 256, 256, 16
    $region5: #{tpu_custom_call.1} parent=1 // pred_fallthru
      _
    // Predicated region
    $region6: #{tpu_custom_call.1} parent=1 // pred_check
      _
    $region7: #{tpu_custom_call.1} parent=1 // pred_check_branch
      %24 = sbr.rel (0) target = $region9
    $region8: #{tpu_custom_call.1} parent=1 // pred_region
      %s26 = ssub.s32 1024, 1024
      %27 = vsyncadd [#allocation6], %s26
      %s28 = sshll.u32 [#allocation5], 4
      %s29 = int_to_ptr.vmem [resolvable:$true] %s28
      %34 = dma.hbm_to_vmem [thread:$0]  %s1, 1024, %s29, [#allocation6], 256, 256, 16
    $region9: #{tpu_custom_call.1} parent=1 // pred_fallthru
      _
    // Predicated region
    $region10: #{tpu_custom_call.1} parent=1 // pred_check
      _
    $region11: #{tpu_custom_call.1} parent=1 // pred_check_branch
      %36 = sbr.rel (0) target = $region13
    $region12: #{tpu_custom_call.1} parent=1 // pred_region
      %s38 = ssub.s32 1024, 1024
      %39 = vsyncadd [#allocation6], %s38
      %s40 = sshll.u32 [#allocation7], 4
      %s41 = int_to_ptr.vmem [resolvable:$true] %s40
      %46 = dma.hbm_to_vmem [thread:$0]  %s2, 1024, %s41, [#allocation6], 256, 256, 16
    $region13: #{tpu_custom_call.1} parent=1 // pred_fallthru
      _
    // Predicated region
    $region14: #{tpu_custom_call.1} parent=1 // pred_check
      _
    $region15: #{tpu_custom_call.1} parent=1 // pred_check_branch
      %48 = sbr.rel (0) target = $region17
    $region16: #{tpu_custom_call.1} parent=1 // pred_region
      %49 = dma.done [#allocation3], 2048
    $region17: #{tpu_custom_call.1} parent=1 // pred_fallthru
      _
    // Predicated region
    $region18: #{tpu_custom_call.1} parent=1 // pred_check
      _
    $region19: #{tpu_custom_call.1} parent=1 // pred_check_branch
      %51 = sbr.rel (0) target = $region21
    $region20: #{tpu_custom_call.1} parent=1 // pred_region
      %52 = dma.done [#allocation6], 1024
    $region21: #{tpu_custom_call.1} parent=1 // pred_fallthru
      _
    // Predicated region
    $region22: #{tpu_custom_call.1} parent=1 // pred_check
      _
    $region23: #{tpu_custom_call.1} parent=1 // pred_check_branch
      %54 = sbr.rel (0) target = $region25
    $region24: #{tpu_custom_call.1} parent=1 // pred_region
      %55 = dma.done [#allocation6], 1024
    $region25: #{tpu_custom_call.1} parent=1 // pred_fallthru
      _
    %v56 = vld [vmem:[#allocation2] sm:$0xff]
    %v57 = vld [vmem:[#allocation2 + $0x8] sm:$0xff]
    %v58 = vld [vmem:[#allocation2 + $0x10] sm:$0xff]
    %v59 = vld [vmem:[#allocation2 + $0x18] sm:$0xff]
    %v60 = vld [vmem:[#allocation2 + $0x20] sm:$0xff]
    %v61 = vld [vmem:[#allocation2 + $0x28] sm:$0xff]
    %v62 = vld [vmem:[#allocation2 + $0x30] sm:$0xff]
    %v63 = vld [vmem:[#allocation2 + $0x38] sm:$0xff]
    %v64 = vld [vmem:[#allocation2 + $0x40] sm:$0xff]
    %v65 = vld [vmem:[#allocation2 + $0x48] sm:$0xff]
    %v66 = vld [vmem:[#allocation2 + $0x50] sm:$0xff]
    %v67 = vld [vmem:[#allocation2 + $0x58] sm:$0xff]
    %v68 = vld [vmem:[#allocation2 + $0x60] sm:$0xff]
    %v69 = vld [vmem:[#allocation2 + $0x68] sm:$0xff]
    %v70 = vld [vmem:[#allocation2 + $0x70] sm:$0xff]
    %v71 = vld [vmem:[#allocation2 + $0x78] sm:$0xff]
    %v72 = vadd.f32 %v56, %v57
    %73 = vadd.xlane.f32.xlu0 %v72
    %v74 = vpop.xlane.xlu0 %73
    %v75 = vadd.f32 %v58, %v59
    %76 = vadd.xlane.f32.xlu0 %v75
    %v77 = vpop.xlane.xlu0 %76
    %v78 = vadd.f32 %v60, %v61
    %79 = vadd.xlane.f32.xlu0 %v78
    %v80 = vpop.xlane.xlu0 %79
    %v81 = vadd.f32 %v62, %v63
    %82 = vadd.xlane.f32.xlu0 %v81
    %v83 = vpop.xlane.xlu0 %82
    %v84 = vadd.f32 %v64, %v65
    %85 = vadd.xlane.f32.xlu0 %v84
    %v86 = vpop.xlane.xlu0 %85
    %v87 = vadd.f32 %v66, %v67
    %88 = vadd.xlane.f32.xlu0 %v87
    %v89 = vpop.xlane.xlu0 %88
    %v90 = vadd.f32 %v68, %v69
    %91 = vadd.xlane.f32.xlu0 %v90
    %v92 = vpop.xlane.xlu0 %91
    %v93 = vadd.f32 %v70, %v71
    %94 = vadd.xlane.f32.xlu0 %v93
    %v95 = vpop.xlane.xlu0 %94
    %v96 = vmul.f32 %v56, %v56
    %v97 = vmul.f32 %v57, %v57
    %v98 = vmul.f32 %v58, %v58
    %v99 = vmul.f32 %v59, %v59
    %v100 = vmul.f32 %v60, %v60
    %v101 = vmul.f32 %v61, %v61
    %v102 = vmul.f32 %v62, %v62
    %v103 = vmul.f32 %v63, %v63
    %v104 = vmul.f32 %v64, %v64
    %v105 = vmul.f32 %v65, %v65
    %v106 = vmul.f32 %v66, %v66
    %v107 = vmul.f32 %v67, %v67
    %v108 = vmul.f32 %v68, %v68
    %v109 = vmul.f32 %v69, %v69
    %v110 = vmul.f32 %v70, %v70
    %v111 = vmul.f32 %v71, %v71
    %v112 = vadd.f32 %v96, %v97
    %113 = vadd.xlane.f32.xlu0 %v112
    %v114 = vpop.xlane.xlu0 %113
    %v115 = vadd.f32 %v98, %v99
    %116 = vadd.xlane.f32.xlu0 %v115
    %v117 = vpop.xlane.xlu0 %116
    %v118 = vadd.f32 %v100, %v101
    %119 = vadd.xlane.f32.xlu0 %v118
    %v120 = vpop.xlane.xlu0 %119
    %v121 = vadd.f32 %v102, %v103
    %122 = vadd.xlane.f32.xlu0 %v121
    %v123 = vpop.xlane.xlu0 %122
    %v124 = vadd.f32 %v104, %v105
    %125 = vadd.xlane.f32.xlu0 %v124
    %v126 = vpop.xlane.xlu0 %125
    %v127 = vadd.f32 %v106, %v107
    %128 = vadd.xlane.f32.xlu0 %v127
    %v129 = vpop.xlane.xlu0 %128
    %v130 = vadd.f32 %v108, %v109
    %131 = vadd.xlane.f32.xlu0 %v130
    %v132 = vpop.xlane.xlu0 %131
    %v133 = vadd.f32 %v110, %v111
    %134 = vadd.xlane.f32.xlu0 %v133
    %v135 = vpop.xlane.xlu0 %134
    %v136 = vmul.f32 %v74, 0.00390625
    %v137 = vmul.f32 %v77, 0.00390625
    %v138 = vmul.f32 %v80, 0.00390625
    %v139 = vmul.f32 %v83, 0.00390625
    %v140 = vmul.f32 %v86, 0.00390625
    %v141 = vmul.f32 %v89, 0.00390625
    %v142 = vmul.f32 %v92, 0.00390625
    %v143 = vmul.f32 %v95, 0.00390625
    %v144 = vmul.f32 %v74, %v136
    %v145 = vmul.f32 %v77, %v137
    %v146 = vmul.f32 %v80, %v138
    %v147 = vmul.f32 %v83, %v139
    %v148 = vmul.f32 %v86, %v140
    %v149 = vmul.f32 %v89, %v141
    %v150 = vmul.f32 %v92, %v142
    %v151 = vmul.f32 %v95, %v143
    %v152 = vsub.f32 %v114, %v144
    %v153 = vsub.f32 %v117, %v145
    %v154 = vsub.f32 %v120, %v146
    %v155 = vsub.f32 %v123, %v147
    %v156 = vsub.f32 %v126, %v148
    %v157 = vsub.f32 %v129, %v149
    %v158 = vsub.f32 %v132, %v150
    %v159 = vsub.f32 %v135, %v151
    %v160 = vmax.f32 %v152, 0.0
    %v161 = vmax.f32 %v153, 0.0
    %v162 = vmax.f32 %v154, 0.0
    %v163 = vmax.f32 %v155, 0.0
    %v164 = vmax.f32 %v156, 0.0
    %v165 = vmax.f32 %v157, 0.0
    %v166 = vmax.f32 %v158, 0.0
    %v167 = vmax.f32 %v159, 0.0
    %v168 = vmul.f32 %v160, 0.003921569
    %v169 = vmul.f32 %v161, 0.003921569
    %v170 = vmul.f32 %v162, 0.003921569
    %v171 = vmul.f32 %v163, 0.003921569
    %v172 = vmul.f32 %v164, 0.003921569
    %v173 = vmul.f32 %v165, 0.003921569
    %v174 = vmul.f32 %v166, 0.003921569
    %v175 = vmul.f32 %v167, 0.003921569
    %v176 = vadd.f32 %v168, 1e-05
    %v177 = vadd.f32 %v169, 1e-05
    %v178 = vadd.f32 %v170, 1e-05
    %v179 = vadd.f32 %v171, 1e-05
    %v180 = vadd.f32 %v172, 1e-05
    %v181 = vadd.f32 %v173, 1e-05
    %v182 = vadd.f32 %v174, 1e-05
    %v183 = vadd.f32 %v175, 1e-05
    %v184 = vrsqrt.pop %v176
    %v185 = vrsqrt.pop %v177
    %v186 = vrsqrt.pop %v178
    %v187 = vrsqrt.pop %v179
    %v188 = vrsqrt.pop %v180
    %v189 = vrsqrt.pop %v181
    %v190 = vrsqrt.pop %v182
    %v191 = vrsqrt.pop %v183
    %v192 = vld [vmem:[#allocation5] sm:$0xff]
    %v193 = vld [vmem:[#allocation5 + $0x8] sm:$0xff]
    %v194 = vld [vmem:[#allocation5 + $0x10] sm:$0xff]
    %v195 = vld [vmem:[#allocation5 + $0x18] sm:$0xff]
    %v196 = vld [vmem:[#allocation5 + $0x20] sm:$0xff]
    %v197 = vld [vmem:[#allocation5 + $0x28] sm:$0xff]
    %v198 = vld [vmem:[#allocation5 + $0x30] sm:$0xff]
    %v199 = vld [vmem:[#allocation5 + $0x38] sm:$0xff]
    %v200 = vld [vmem:[#allocation7] sm:$0xff]
    %v201 = vld [vmem:[#allocation7 + $0x8] sm:$0xff]
    %v202 = vld [vmem:[#allocation7 + $0x10] sm:$0xff]
    %v203 = vld [vmem:[#allocation7 + $0x18] sm:$0xff]
    %v204 = vld [vmem:[#allocation7 + $0x20] sm:$0xff]
    %v205 = vld [vmem:[#allocation7 + $0x28] sm:$0xff]
    %v206 = vld [vmem:[#allocation7 + $0x30] sm:$0xff]
    %v207 = vld [vmem:[#allocation7 + $0x38] sm:$0xff]
    %v208 = vsub.f32 %v56, %v136
    %v209 = vsub.f32 %v57, %v136
    %v210 = vsub.f32 %v58, %v137
    %v211 = vsub.f32 %v59, %v137
    %v212 = vsub.f32 %v60, %v138
    %v213 = vsub.f32 %v61, %v138
    %v214 = vsub.f32 %v62, %v139
    %v215 = vsub.f32 %v63, %v139
    %v216 = vsub.f32 %v64, %v140
    %v217 = vsub.f32 %v65, %v140
    %v218 = vsub.f32 %v66, %v141
    %v219 = vsub.f32 %v67, %v141
    %v220 = vsub.f32 %v68, %v142
    %v221 = vsub.f32 %v69, %v142
    %v222 = vsub.f32 %v70, %v143
    %v223 = vsub.f32 %v71, %v143
    %v224 = vmul.f32 %v208, %v184
    %v225 = vmul.f32 %v209, %v184
    %v226 = vmul.f32 %v210, %v185
    %v227 = vmul.f32 %v211, %v185
    %v228 = vmul.f32 %v212, %v186
    %v229 = vmul.f32 %v213, %v186
    %v230 = vmul.f32 %v214, %v187
    %v231 = vmul.f32 %v215, %v187
    %v232 = vmul.f32 %v216, %v188
    %v233 = vmul.f32 %v217, %v188
    %v234 = vmul.f32 %v218, %v189
    %v235 = vmul.f32 %v219, %v189
    %v236 = vmul.f32 %v220, %v190
    %v237 = vmul.f32 %v221, %v190
    %v238 = vmul.f32 %v222, %v191
    %v239 = vmul.f32 %v223, %v191
    %v240 = vmul.f32 %v224, %v192
    %v241 = vmul.f32 %v225, %v193
    %v242 = vmul.f32 %v226, %v194
    %v243 = vmul.f32 %v227, %v195
    %v244 = vmul.f32 %v228, %v196
    %v245 = vmul.f32 %v229, %v197
    %v246 = vmul.f32 %v230, %v198
    %v247 = vmul.f32 %v231, %v199
    %v248 = vmul.f32 %v232, %v192
    %v249 = vmul.f32 %v233, %v193
    %v250 = vmul.f32 %v234, %v194
    %v251 = vmul.f32 %v235, %v195
    %v252 = vmul.f32 %v236, %v196
    %v253 = vmul.f32 %v237, %v197
    %v254 = vmul.f32 %v238, %v198
    %v255 = vmul.f32 %v239, %v199
    %v256 = vadd.f32 %v240, %v200
    %v257 = vadd.f32 %v241, %v201
    %v258 = vadd.f32 %v242, %v202
    %v259 = vadd.f32 %v243, %v203
    %v260 = vadd.f32 %v244, %v204
    %v261 = vadd.f32 %v245, %v205
    %v262 = vadd.f32 %v246, %v206
    %v263 = vadd.f32 %v247, %v207
    %v264 = vadd.f32 %v248, %v200
    %v265 = vadd.f32 %v249, %v201
    %v266 = vadd.f32 %v250, %v202
    %v267 = vadd.f32 %v251, %v203
    %v268 = vadd.f32 %v252, %v204
    %v269 = vadd.f32 %v253, %v205
    %v270 = vadd.f32 %v254, %v206
    %v271 = vadd.f32 %v255, %v207
    %272 = vst [vmem:[#allocation8] sm:$0xff] %v256
    %273 = vst [vmem:[#allocation8 + $0x8] sm:$0xff] %v257
    %274 = vst [vmem:[#allocation8 + $0x10] sm:$0xff] %v258
    %275 = vst [vmem:[#allocation8 + $0x18] sm:$0xff] %v259
    %276 = vst [vmem:[#allocation8 + $0x20] sm:$0xff] %v260
    %277 = vst [vmem:[#allocation8 + $0x28] sm:$0xff] %v261
    %278 = vst [vmem:[#allocation8 + $0x30] sm:$0xff] %v262
    %279 = vst [vmem:[#allocation8 + $0x38] sm:$0xff] %v263
    %280 = vst [vmem:[#allocation8 + $0x40] sm:$0xff] %v264
    %281 = vst [vmem:[#allocation8 + $0x48] sm:$0xff] %v265
    %282 = vst [vmem:[#allocation8 + $0x50] sm:$0xff] %v266
    %283 = vst [vmem:[#allocation8 + $0x58] sm:$0xff] %v267
    %284 = vst [vmem:[#allocation8 + $0x60] sm:$0xff] %v268
    %285 = vst [vmem:[#allocation8 + $0x68] sm:$0xff] %v269
    %286 = vst [vmem:[#allocation8 + $0x70] sm:$0xff] %v270
    %287 = vst [vmem:[#allocation8 + $0x78] sm:$0xff] %v271
    // Predicated region
    $region26: #{tpu_custom_call.1} parent=1 // pred_check
      _
    $region27: #{tpu_custom_call.1} parent=1 // pred_check_branch
      %289 = sbr.rel (0) target = $region29
    $region28: #{tpu_custom_call.1} parent=1 // pred_region
      %s291 = ssub.s32 2048, 2048
      %292 = vsyncadd [#allocation4], %s291
      %s293 = sshll.u32 [#allocation8], 4
      %s294 = int_to_ptr.vmem [resolvable:$true] %s293
      %299 = dma.vmem_to_hbm [thread:$0]  %s294, 2048, %s3, [#allocation4], 256, 256, 16
    $region29: #{tpu_custom_call.1} parent=1 // pred_fallthru
      _
    // Predicated region
    $region30: #{tpu_custom_call.1} parent=1 // pred_check
      _
    $region31: #{tpu_custom_call.1} parent=1 // pred_check_branch
      %301 = sbr.rel (0) target = $region33
    $region32: #{tpu_custom_call.1} parent=1 // pred_region
      %302 = dma.done [#allocation4], 2048
    $region33: #{tpu_custom_call.1} parent=1 // pred_fallthru
      _
    %303 = vsyncpa [#allocation3], 1
    %304 = vsyncpa [#allocation6], 1
    %305 = vsyncpa [#allocation4], 1

</llo_original>
